<compile_context>
chip_gen: v6e
topology: v6e:2x2x1
jax: 0.10.0
libtpu: 0.0.40
codegen_flags: <defaults>
</compile_context>

<pallas_src>
import jax
import jax.numpy as jnp
from jax.experimental import pallas as pl
from jax.experimental.pallas import tpu as pltpu

F = 20            # feature dim fixed by the module's 20x20 weights
BATCH_TILE = 2048  # rows per grid step for large batches (sweepable 2048-8192)


def _fused_matmul_kernel(x_ref, w1_ref, w2_ref, o_ref):
    # Fuse W = W1 @ W2 in-kernel (tiny 20x20x20 push, hidden under DMA),
    # then a single MXU dot per batch tile with f32 accumulation.
    w = jnp.dot(w1_ref[...], w2_ref[...], preferred_element_type=jnp.float32)
    o_ref[...] = jnp.dot(
        x_ref[...], w.astype(x_ref.dtype), preferred_element_type=jnp.float32
    ).astype(o_ref.dtype)


def mymodel_forward(x, weight1, weight2):
    """y = (x @ weight1) @ weight2, computed as x @ (weight1 @ weight2)."""
    B, f = x.shape
    assert f == F and weight1.shape == (F, F) and weight2.shape == (F, F)

    # Tile rows: big enough to amortize grid-step overhead, but never larger
    # than the (sublane-rounded) batch so tiny batches stay a single cheap
    # grid step.  Partial last blocks are handled by Pallas' masked stores.
    tile = min(BATCH_TILE, max(8, ((B + 7) // 8) * 8))
    n_tiles = pl.cdiv(B, tile)

    return pl.pallas_call(
        _fused_matmul_kernel,
        out_shape=jax.ShapeDtypeStruct((B, F), x.dtype),
        grid=(n_tiles,),
        in_specs=[
            # Last dim equals the full array dim (20), so no HBM padding.
            pl.BlockSpec((tile, F), lambda i: (i, 0)),
            pl.BlockSpec((F, F), lambda i: (0, 0)),   # weights stay resident
            pl.BlockSpec((F, F), lambda i: (0, 0)),
        ],
        out_specs=pl.BlockSpec((tile, F), lambda i: (i, 0)),
        compiler_params=pltpu.CompilerParams(
            dimension_semantics=("parallel",)          # lets v7x split batch
        ),
    )(x, weight1, weight2)


if __name__ == "__main__":
    key = jax.random.PRNGKey(0)
    k_x, k_w1, k_w2, k_xl = jax.random.split(key, 4)

    # Small, module-consistent shapes: feature dim fixed to 20 by the weights.
    B = 8
    x = jax.random.uniform(k_x, (B, F), dtype=jnp.float32)
    # Deterministic parameter init mirroring torch.rand (uniform [0, 1)).
    weight1 = jax.random.uniform(k_w1, (F, F), dtype=jnp.float32)
    weight2 = jax.random.uniform(k_w2, (F, F), dtype=jnp.float32)

    # Small-batch path (single grid step, 8-row tile, no HBM padding).
    out = jax.block_until_ready(mymodel_forward(x, weight1, weight2))
    ref = (x @ weight1) @ weight2
    assert out.shape == (B, F)
    assert jnp.allclose(out, ref, atol=1e-3, rtol=1e-3)

    # Large-batch path (2 x 2048-row tiles, weights resident, "parallel").
    B_large = 4096
    x_large = jax.random.uniform(k_xl, (B_large, F), dtype=jnp.float32)
    out_l = jax.block_until_ready(mymodel_forward(x_large, weight1, weight2))
    ref_l = (x_large @ weight1) @ weight2
    assert out_l.shape == (B_large, F)
    assert jnp.allclose(out_l, ref_l, atol=1e-3, rtol=1e-3)

    # Non-multiple batch (exercises Pallas' masked partial last block).
    B_odd = 3000
    x_odd = jax.random.uniform(k_xl, (B_odd, F), dtype=jnp.float32)
    out_o = jax.block_until_ready(mymodel_forward(x_odd, weight1, weight2))
    ref_o = (x_odd @ weight1) @ weight2
    assert out_o.shape == (B_odd, F)
    assert jnp.allclose(out_o, ref_o, atol=1e-3, rtol=1e-3)

    print("KERNEL_OK")
</pallas_src>

<mosaic_0001>
module attributes {stable_mosaic.version = 11 : i64} {
  func.func @_fused_matmul_kernel(%arg0: i32, %arg1: memref<8x20xf32, #tpu.memory_space<vmem>>, %arg2: memref<20x20xf32, #tpu.memory_space<vmem>>, %arg3: memref<20x20xf32, #tpu.memory_space<vmem>>, %arg4: memref<8x20xf32, #tpu.memory_space<vmem>>) attributes {dimension_semantics = [#tpu.dimension_semantics<parallel>], iteration_bounds = array<i64: 1>, scalar_prefetch = 0 : i64, scratch_operands = 0 : i64, tpu.core_type = #tpu.core_type<tc>, window_params = [{transform_indices = @transform_0, window_bounds = array<i64: 8, 20>}, {pipeline_mode = #tpu.pipeline_mode<synchronous>, transform_indices = @transform_1, window_bounds = array<i64: 20, 20>}, {pipeline_mode = #tpu.pipeline_mode<synchronous>, transform_indices = @transform_2, window_bounds = array<i64: 20, 20>}, {transform_indices = @transform_3, window_bounds = array<i64: 8, 20>}]} {
    %c0 = arith.constant 0 : index
    %c0_0 = arith.constant 0 : index
    %0 = vector.load %arg2[%c0, %c0_0] : memref<20x20xf32, #tpu.memory_space<vmem>>, vector<20x20xf32>
    %c0_1 = arith.constant 0 : index
    %c0_2 = arith.constant 0 : index
    %1 = vector.load %arg3[%c0_1, %c0_2] : memref<20x20xf32, #tpu.memory_space<vmem>>, vector<20x20xf32>
    %cst = arith.constant dense<0.000000e+00> : vector<20x20xf32>
    %2 = tpu.matmul %0, %1, %cst {dimension_numbers = #tpu.dot_dimension_numbers<[1], [0], [0], [1], [0, 0, 1, 1], [], []>} : vector<20x20xf32>, vector<20x20xf32>, vector<20x20xf32> -> vector<20x20xf32>
    %c0_3 = arith.constant 0 : index
    %c0_4 = arith.constant 0 : index
    %3 = vector.load %arg1[%c0_3, %c0_4] : memref<8x20xf32, #tpu.memory_space<vmem>>, vector<8x20xf32>
    %cst_5 = arith.constant dense<0.000000e+00> : vector<8x20xf32>
    %4 = tpu.matmul %3, %2, %cst_5 {dimension_numbers = #tpu.dot_dimension_numbers<[1], [0], [0], [1], [0, 0, 1, 1], [], []>} : vector<8x20xf32>, vector<20x20xf32>, vector<8x20xf32> -> vector<8x20xf32>
    %c0_6 = arith.constant 0 : index
    %c0_7 = arith.constant 0 : index
    %5 = vector.load %arg4[%c0_6, %c0_7] : memref<8x20xf32, #tpu.memory_space<vmem>>, vector<8x20xf32>
    tpu.vector_store %arg4[%c0_6, %c0_7], %4 {strides = array<i32>} : memref<8x20xf32, #tpu.memory_space<vmem>>, vector<8x20xf32>,
    return
  }
  func.func @transform_0(%arg0: i32) -> (i32, i32) {
    %c0_i32 = arith.constant 0 : i32
    %c0_i32_0 = arith.constant 0 : i32
    return %arg0, %c0_i32 : i32, i32
  }
  func.func @transform_1(%arg0: i32) -> (i32, i32) {
    %c0_i32 = arith.constant 0 : i32
    %c0_i32_0 = arith.constant 0 : i32
    %c0_i32_1 = arith.constant 0 : i32
    return %c0_i32, %c0_i32_0 : i32, i32
  }
  func.func @transform_2(%arg0: i32) -> (i32, i32) {
    %c0_i32 = arith.constant 0 : i32
    %c0_i32_0 = arith.constant 0 : i32
    %c0_i32_1 = arith.constant 0 : i32
    return %c0_i32, %c0_i32_0 : i32, i32
  }
  func.func @transform_3(%arg0: i32) -> (i32, i32) {
    %c0_i32 = arith.constant 0 : i32
    %c0_i32_0 = arith.constant 0 : i32
    return %arg0, %c0_i32 : i32, i32
  }
}

</mosaic_0001>

<llo_original>
// kernel: tpu_custom_call.1
$region0: #{tpu_custom_call.1}
  #allocation0 [shape = 'u32[]', space=smem, size = 0x4, offset = 0x4, fixed_abs, tag = 'smem constant byte address 0x4 - core index']
  #allocation1 [shape = 'u32[144,128]{1,0:T(1,128)}', space=vmem, size = 0x12000, scoped, tag = 'internal scratch']
  %s0 = inlined_call_operand.hbm [shape: f32[8,20], index: 0, kind: input, shape index: {}]
  %s1 = inlined_call_operand.hbm [shape: f32[20,20], index: 1, kind: input, shape index: {}]
  %s2 = inlined_call_operand.hbm [shape: f32[20,20], index: 2, kind: input, shape index: {}]
  %s3 = inlined_call_operand.hbm [shape: f32[8,20], index: 3, kind: output, shape index: {}]
  %s4 = sld [smem:[#allocation0]]
  $region34: #{tpu_custom_call.1} parent=0
    _
  %s6 = ssub.s32 1, %s4
  %s7 = scalar_select 0, %s6, %s4
  $region1: #{tpu_custom_call.1} parent=0
    #allocation2 [shape = 'u8[4096]{0}', space=vmem, size = 0x1000, scoped, tag = 'input window, operand 0, single buffered']
    #allocation3 [shape = 's32[1]{0}', space=sflag, size = 0x4, scoped, tag = 'scoped memory for tpu_custom_call.1']
    #allocation4 [shape = 's32[1]{0}', space=sflag, size = 0x4, scoped, tag = 'scoped memory for tpu_custom_call.1']
    #allocation5 [shape = 'u8[12288]{0}', space=vmem, size = 0x3000, scoped, tag = 'input window, operand 1, single buffered']
    #allocation6 [shape = 's32[1]{0}', space=sflag, size = 0x4, scoped, tag = 'scoped memory for tpu_custom_call.1']
    #allocation7 [shape = 'u8[12288]{0}', space=vmem, size = 0x3000, scoped, tag = 'input window, operand 2, single buffered']
    #allocation8 [shape = 'u8[4096]{0}', space=vmem, size = 0x1000, scoped, tag = 'output window, operand 0, single buffered']
    %8 = vsyncpa [#allocation3], 0
    %9 = vsyncpa [#allocation6], 0
    %10 = vsyncpa [#allocation4], 0
    // Predicated region
    $region2: #{tpu_custom_call.1} parent=1 // pred_check
      _
    $region3: #{tpu_custom_call.1} parent=1 // pred_check_branch
      %12 = sbr.rel (0) target = $region5
    $region4: #{tpu_custom_call.1} parent=1 // pred_region
      %s14 = ssub.s32 128, 128
      %15 = vsyncadd [#allocation3], %s14
      %s17 = sshll.u32 [#allocation2], 4
      %s18 = int_to_ptr.vmem [resolvable:$true] %s17
      %20 = dma.hbm_to_vmem [thread:$0]  %s0, 128, %s18, [#allocation3]
    $region5: #{tpu_custom_call.1} parent=1 // pred_fallthru
      _
    // Predicated region
    $region6: #{tpu_custom_call.1} parent=1 // pred_check
      _
    $region7: #{tpu_custom_call.1} parent=1 // pred_check_branch
      %22 = sbr.rel (0) target = $region9
    $region8: #{tpu_custom_call.1} parent=1 // pred_region
      %s24 = ssub.s32 384, 384
      %25 = vsyncadd [#allocation6], %s24
      %s26 = sshll.u32 [#allocation5], 4
      %s27 = int_to_ptr.vmem [resolvable:$true] %s26
      %32 = dma.hbm_to_vmem [thread:$0]  %s1, 384, %s27, [#allocation6], 128, 128, 8
    $region9: #{tpu_custom_call.1} parent=1 // pred_fallthru
      _
    // Predicated region
    $region10: #{tpu_custom_call.1} parent=1 // pred_check
      _
    $region11: #{tpu_custom_call.1} parent=1 // pred_check_branch
      %34 = sbr.rel (0) target = $region13
    $region12: #{tpu_custom_call.1} parent=1 // pred_region
      %s36 = ssub.s32 384, 384
      %37 = vsyncadd [#allocation6], %s36
      %s38 = sshll.u32 [#allocation7], 4
      %s39 = int_to_ptr.vmem [resolvable:$true] %s38
      %44 = dma.hbm_to_vmem [thread:$0]  %s2, 384, %s39, [#allocation6], 128, 128, 8
    $region13: #{tpu_custom_call.1} parent=1 // pred_fallthru
      _
    // Predicated region
    $region14: #{tpu_custom_call.1} parent=1 // pred_check
      _
    $region15: #{tpu_custom_call.1} parent=1 // pred_check_branch
      %46 = sbr.rel (0) target = $region17
    $region16: #{tpu_custom_call.1} parent=1 // pred_region
      %47 = dma.done [#allocation3], 128
    $region17: #{tpu_custom_call.1} parent=1 // pred_fallthru
      _
    // Predicated region
    $region18: #{tpu_custom_call.1} parent=1 // pred_check
      _
    $region19: #{tpu_custom_call.1} parent=1 // pred_check_branch
      %49 = sbr.rel (0) target = $region21
    $region20: #{tpu_custom_call.1} parent=1 // pred_region
      %50 = dma.done [#allocation6], 384
    $region21: #{tpu_custom_call.1} parent=1 // pred_fallthru
      _
    // Predicated region
    $region22: #{tpu_custom_call.1} parent=1 // pred_check
      _
    $region23: #{tpu_custom_call.1} parent=1 // pred_check_branch
      %52 = sbr.rel (0) target = $region25
    $region24: #{tpu_custom_call.1} parent=1 // pred_region
      %53 = dma.done [#allocation6], 384
    $region25: #{tpu_custom_call.1} parent=1 // pred_fallthru
      _
    %v54 = vld [vmem:[#allocation5] sm:$0xff]
    %v55 = vld [vmem:[#allocation5 + $0x8] sm:$0xff]
    %v56 = vld [vmem:[#allocation5 + $0x10] sm:$0xf]
    %v57 = vld [vmem:[#allocation7] sm:$0xff]
    %v58 = vld [vmem:[#allocation7 + $0x8] sm:$0xff]
    %v59 = vld [vmem:[#allocation7 + $0x10] sm:$0xf]
    %vm60 = vcmask 162816
    %v62 = vsel %vm60, %v54, 0
    %v65 = vsel %vm60, %v55, 0
    %v68 = vsel %vm60, %v56, 0
    %vm70 = vcmask 1043456
    %v72 = vsel %vm70, %v59, 0
    %74 = vmatprep.subr.mxu0 0.0
    %75 = vmatpush1.msra.mxu0 0.0
    %76 = vmatprep.subr.mxu0 0.0
    %77 = vmatpush1.msra.mxu0 0.0
    %78 = vmatprep.subr.mxu0 0.0
    %79 = vmatpush1.msra.mxu0 0.0
    %80 = vmatprep.subr.mxu0 0.0
    %81 = vmatpush1.msra.mxu0 0.0
    %82 = vmatprep.subr.mxu0 0.0
    %83 = vmatpush1.msra.mxu0 0.0
    %84 = vmatprep.subr.mxu0 0.0
    %85 = vmatpush1.msra.mxu0 0.0
    %86 = vmatprep.subr.mxu0 0.0
    %87 = vmatpush1.msra.mxu0 0.0
    %88 = vmatprep.subr.mxu0 0.0
    %89 = vmatpush1.msra.mxu0 0.0
    %90 = vmatprep.subr.mxu0 0.0
    %91 = vmatpush1.msra.mxu0 0.0
    %92 = vmatprep.subr.mxu0 0.0
    %93 = vmatpush1.msra.mxu0 0.0
    %94 = vmatprep.subr.mxu0 0.0
    %95 = vmatpush1.msra.mxu0 0.0
    %96 = vmatprep.subr.mxu0 0.0
    %97 = vmatpush1.msra.mxu0 0.0
    %98 = vmatprep.subr.mxu0 0.0
    %99 = vmatpush1.msra.mxu0 0.0
    %100 = vmatprep.subr.mxu0 0.0
    %101 = vmatpush1.msra.mxu0 %v72
    %102 = vmatprep.subr.mxu0 0.0
    %103 = vmatpush1.msra.mxu0 %v58
    %104 = vmatprep.subr.mxu0 0.0
    %105 = vmatpush1.msra.mxu0 %v57
    %106 = vmatprep.subr.mxu0 0.0
    %107 = vmatpush2.msra.mxu0 0.0
    %108 = vmatprep.subr.mxu0 0.0
    %109 = vmatpush2.msra.mxu0 0.0
    %110 = vmatprep.subr.mxu0 0.0
    %111 = vmatpush2.msra.mxu0 0.0
    %112 = vmatprep.subr.mxu0 0.0
    %113 = vmatpush2.msra.mxu0 0.0
    %114 = vmatprep.subr.mxu0 0.0
    %115 = vmatpush2.msra.mxu0 0.0
    %116 = vmatprep.subr.mxu0 0.0
    %117 = vmatpush2.msra.mxu0 0.0
    %118 = vmatprep.subr.mxu0 0.0
    %119 = vmatpush2.msra.mxu0 0.0
    %120 = vmatprep.subr.mxu0 0.0
    %121 = vmatpush2.msra.mxu0 0.0
    %122 = vmatprep.subr.mxu0 0.0
    %123 = vmatpush2.msra.mxu0 0.0
    %124 = vmatprep.subr.mxu0 0.0
    %125 = vmatpush2.msra.mxu0 0.0
    %126 = vmatprep.subr.mxu0 0.0
    %127 = vmatpush2.msra.mxu0 0.0
    %128 = vmatprep.subr.mxu0 0.0
    %129 = vmatpush2.msra.mxu0 0.0
    %130 = vmatprep.subr.mxu0 0.0
    %131 = vmatpush2.msra.mxu0 0.0
    %132 = vmatprep.subr.mxu0 0.0
    %133 = vmatpush2.msra.mxu0 0.0
    %134 = vmatprep.subr.mxu0 0.0
    %135 = vmatpush2.msra.mxu0 0.0
    %136 = vmatprep.subr.mxu0 0.0
    %137 = vmatpush2.msra.mxu0 0.0
    %138 = vmatprep.mubr.f32.mxu0 0.0
    %139 = vmatmul.mubr.f32.gmra.mxu0 %v62
    %v140 = vpop.f32.mrf.mxu0
    %v141 = vadd.f32 0.0, %v140
    %v142 = vpop.f32.mrf.mxu0
    %143 = vmatprep.mubr.f32.mxu0 0.0
    %144 = vmatmul.mubr.f32.gmra.mxu0 %v65
    %v145 = vpop.f32.mrf.mxu0
    %v146 = vadd.f32 0.0, %v145
    %v147 = vpop.f32.mrf.mxu0
    %148 = vmatprep.mubr.f32.mxu0 0.0
    %149 = vmatmul.mubr.f32.gmra.mxu0 %v68
    %v150 = vpop.f32.mrf.mxu0
    %v151 = vadd.f32 0.0, %v150
    %v152 = vpop.f32.mrf.mxu0
    %153 = vdwg.mxu0
    %v154 = vld [vmem:[#allocation2] sm:$0xff]
    %v156 = vsel %vm60, %v154, 0
    %v159 = vsel %vm70, %v151, 0
    %161 = vmatprep.subr.mxu0 0.0
    %162 = vmatpush1.msra.mxu0 0.0
    %163 = vmatprep.subr.mxu0 0.0
    %164 = vmatpush1.msra.mxu0 0.0
    %165 = vmatprep.subr.mxu0 0.0
    %166 = vmatpush1.msra.mxu0 0.0
    %167 = vmatprep.subr.mxu0 0.0
    %168 = vmatpush1.msra.mxu0 0.0
    %169 = vmatprep.subr.mxu0 0.0
    %170 = vmatpush1.msra.mxu0 0.0
    %171 = vmatprep.subr.mxu0 0.0
    %172 = vmatpush1.msra.mxu0 0.0
    %173 = vmatprep.subr.mxu0 0.0
    %174 = vmatpush1.msra.mxu0 0.0
    %175 = vmatprep.subr.mxu0 0.0
    %176 = vmatpush1.msra.mxu0 0.0
    %177 = vmatprep.subr.mxu0 0.0
    %178 = vmatpush1.msra.mxu0 0.0
    %179 = vmatprep.subr.mxu0 0.0
    %180 = vmatpush1.msra.mxu0 0.0
    %181 = vmatprep.subr.mxu0 0.0
    %182 = vmatpush1.msra.mxu0 0.0
    %183 = vmatprep.subr.mxu0 0.0
    %184 = vmatpush1.msra.mxu0 0.0
    %185 = vmatprep.subr.mxu0 0.0
    %186 = vmatpush1.msra.mxu0 0.0
    %187 = vmatprep.subr.mxu0 0.0
    %188 = vmatpush1.msra.mxu0 %v159
    %189 = vmatprep.subr.mxu0 0.0
    %190 = vmatpush1.msra.mxu0 %v146
    %191 = vmatprep.subr.mxu0 0.0
    %192 = vmatpush1.msra.mxu0 %v141
    %193 = vmatprep.subr.mxu0 0.0
    %194 = vmatpush2.msra.mxu0 0.0
    %195 = vmatprep.subr.mxu0 0.0
    %196 = vmatpush2.msra.mxu0 0.0
    %197 = vmatprep.subr.mxu0 0.0
    %198 = vmatpush2.msra.mxu0 0.0
    %199 = vmatprep.subr.mxu0 0.0
    %200 = vmatpush2.msra.mxu0 0.0
    %201 = vmatprep.subr.mxu0 0.0
    %202 = vmatpush2.msra.mxu0 0.0
    %203 = vmatprep.subr.mxu0 0.0
    %204 = vmatpush2.msra.mxu0 0.0
    %205 = vmatprep.subr.mxu0 0.0
    %206 = vmatpush2.msra.mxu0 0.0
    %207 = vmatprep.subr.mxu0 0.0
    %208 = vmatpush2.msra.mxu0 0.0
    %209 = vmatprep.subr.mxu0 0.0
    %210 = vmatpush2.msra.mxu0 0.0
    %211 = vmatprep.subr.mxu0 0.0
    %212 = vmatpush2.msra.mxu0 0.0
    %213 = vmatprep.subr.mxu0 0.0
    %214 = vmatpush2.msra.mxu0 0.0
    %215 = vmatprep.subr.mxu0 0.0
    %216 = vmatpush2.msra.mxu0 0.0
    %217 = vmatprep.subr.mxu0 0.0
    %218 = vmatpush2.msra.mxu0 0.0
    %219 = vmatprep.subr.mxu0 0.0
    %220 = vmatpush2.msra.mxu0 0.0
    %221 = vmatprep.subr.mxu0 0.0
    %222 = vmatpush2.msra.mxu0 0.0
    %223 = vmatprep.subr.mxu0 0.0
    %224 = vmatpush2.msra.mxu0 0.0
    %225 = vmatprep.mubr.f32.mxu0 0.0
    %226 = vmatmul.mubr.f32.gmra.mxu0 %v156
    %v227 = vpop.f32.mrf.mxu0
    %v228 = vadd.f32 0.0, %v227
    %v229 = vpop.f32.mrf.mxu0
    %230 = vdwg.mxu0
    %231 = vst.msk [vmem:[#allocation8] sm:$0xff] %vm60, %v228
    // Predicated region
    $region26: #{tpu_custom_call.1} parent=1 // pred_check
      _
    $region27: #{tpu_custom_call.1} parent=1 // pred_check_branch
      %233 = sbr.rel (0) target = $region29
    $region28: #{tpu_custom_call.1} parent=1 // pred_region
      %s235 = ssub.s32 128, 128
      %236 = vsyncadd [#allocation4], %s235
      %s238 = sshll.u32 [#allocation8], 4
      %s239 = int_to_ptr.vmem [resolvable:$true] %s238
      %241 = dma.vmem_to_hbm [thread:$0]  %s239, 128, %s3, [#allocation4]
    $region29: #{tpu_custom_call.1} parent=1 // pred_fallthru
      _
    // Predicated region
    $region30: #{tpu_custom_call.1} parent=1 // pred_check
      _
    $region31: #{tpu_custom_call.1} parent=1 // pred_check_branch
      %243 = sbr.rel (0) target = $region33
    $region32: #{tpu_custom_call.1} parent=1 // pred_region
      %244 = dma.done [#allocation4], 128
    $region33: #{tpu_custom_call.1} parent=1 // pred_fallthru
      _
    %245 = vsyncpa [#allocation3], 1
    %246 = vsyncpa [#allocation6], 1
    %247 = vsyncpa [#allocation4], 1

</llo_original>
